<compile_context>
chip_gen: v5e
topology: v5e:2x2
jax: 0.10.0
libtpu: 0.0.40
codegen_flags: <defaults>
</compile_context>

<pallas_src>
import jax
import jax.numpy as jnp
from jax.experimental import pallas as pl
from jax.experimental.pallas import tpu as pltpu

INPUT_SIZE = 8
HIDDEN_1 = 16
HIDDEN_2 = 16
OUTPUT_SIZE = 1

DEFAULT_TILE = 16384  # lanes per grid step (max); actual tile sized per batch


def _round_up(a, b):
    return pl.cdiv(a, b) * b


def _mlp_kernel(x_ref, w1_ref, b1_ref, w2_ref, b2_ref, w3_ref, b3_ref, o_ref):
    # x_ref: (8, TILE)      w1: (16, 8)   b1: (16, 1)
    # w2: (16, 16)          b2: (16, 1)   w3: (16, 1)   b3: (1, 1) in SMEM
    # o_ref: (1, TILE) f32
    x = x_ref[...]                                                    # (8, TILE)
    h1 = jnp.dot(w1_ref[...], x, preferred_element_type=jnp.float32)  # (16, TILE)
    h1 = jnp.maximum(h1 + b1_ref[...], 0.0)
    h2 = jnp.dot(w2_ref[...], h1.astype(w2_ref.dtype),
                 preferred_element_type=jnp.float32)                  # (16, TILE)
    h2 = jnp.maximum(h2 + b2_ref[...], 0.0)
    # Layer 3 (16 -> 1): VPU multiply + sublane (XLU) reduce; keeps the MXU
    # off the critical path and the output store lane-dense.
    y = jnp.sum(h2 * w3_ref[...], axis=0, keepdims=True)              # (1, TILE)
    o_ref[...] = y + b3_ref[0, 0]


def atom_energy_nn(x, w1, b1, w2, b2, w3, b3, *, tile=DEFAULT_TILE,
                   feature_major=False, use_bf16=True):
    """Forward pass of AtomEnergyNN.

    x: (N, 8)  (or (8, N) if feature_major=True, which skips the wrapper
       transpose / extra HBM pass).  Params in PyTorch layout: w (out, in),
       b (out,).  Returns (N, 1) float32.
    """
    if feature_major:
        n = x.shape[1]
    else:
        n = x.shape[0]

    mxu_dtype = jnp.bfloat16 if use_bf16 else jnp.float32

    # --- grid / tile sizing -------------------------------------------------
    n128 = _round_up(max(n, 1), 128)                  # lane-align N
    max_tile = _round_up(min(max(tile, 128), n128), 128)
    steps = pl.cdiv(n128, max_tile)
    if n128 >= 256:
        # v7x has 2 TensorCores: guarantee >= 2 (and even) grid steps so the
        # "parallel" grid axis actually gives both cores work.
        steps = max(steps, 2)
        if steps % 2:
            steps += 1
    tile_sz = _round_up(pl.cdiv(n128, steps), 128)    # <= max_tile
    n_pad = tile_sz * steps                           # small (<128*steps) tail waste

    # --- operand prep -------------------------------------------------------
    # Cast to the MXU dtype first so the (only) wrapper-side pad+transpose
    # pass moves half the bytes; it is a single fused XLA op.
    xm = x.astype(mxu_dtype)
    if not feature_major:
        xm = xm.T                                     # (8, N)
    x_t = jnp.pad(xm, ((0, 0), (0, n_pad - n)))       # (8, n_pad), zero tail

    w1m = w1.astype(mxu_dtype)                        # (16, 8)
    w2m = w2.astype(mxu_dtype)                        # (16, 16)
    b1c = b1.astype(jnp.float32).reshape(HIDDEN_1, 1)
    b2c = b2.astype(jnp.float32).reshape(HIDDEN_2, 1)
    w3c = w3.astype(jnp.float32).reshape(HIDDEN_2, 1)  # (1,16) -> (16,1)
    b3c = b3.astype(jnp.float32).reshape(1, 1)         # scalar in SMEM

    resident = lambda shape: pl.BlockSpec(shape, lambda i: (0, 0))

    out_t = pl.pallas_call(
        _mlp_kernel,
        out_shape=jax.ShapeDtypeStruct((OUTPUT_SIZE, n_pad), jnp.float32),
        grid=(steps,),
        in_specs=[
            pl.BlockSpec((INPUT_SIZE, tile_sz), lambda i: (0, i)),  # x tile, pipelined
            resident((HIDDEN_1, INPUT_SIZE)),                       # W1 (VMEM resident)
            resident((HIDDEN_1, 1)),                                # b1
            resident((HIDDEN_2, HIDDEN_1)),                         # W2
            resident((HIDDEN_2, 1)),                                # b2
            resident((HIDDEN_2, 1)),                                # w3 (as column)
            pl.BlockSpec(memory_space=pltpu.MemorySpace.SMEM),      # b3 scalar
        ],
        out_specs=pl.BlockSpec((OUTPUT_SIZE, tile_sz), lambda i: (0, i)),
        compiler_params=pltpu.CompilerParams(
            dimension_semantics=("parallel",),          # 2 TCs on v7x split the batch
            vmem_limit_bytes=32 * 1024 * 1024,          # explicit (v5e default is 16 MiB)
        ),
    )(x_t, w1m, b1c, w2m, b2c, w3c, b3c)

    # Padded lanes carry relu(b1)/relu(b2) garbage; slice them off.
    return out_t[:, :n].T                                            # (N, 1)


def init_params(key):
    """PyTorch-layout params with nn.Linear's U(-1/sqrt(fan_in), 1/sqrt(fan_in)) init."""
    ks = jax.random.split(key, 6)

    def linear(kw, kb, fan_in, fan_out):
        bound = 1.0 / (fan_in ** 0.5)
        w = jax.random.uniform(kw, (fan_out, fan_in), jnp.float32, -bound, bound)
        b = jax.random.uniform(kb, (fan_out,), jnp.float32, -bound, bound)
        return w, b

    w1, b1 = linear(ks[0], ks[1], INPUT_SIZE, HIDDEN_1)
    w2, b2 = linear(ks[2], ks[3], HIDDEN_1, HIDDEN_2)
    w3, b3 = linear(ks[4], ks[5], HIDDEN_2, OUTPUT_SIZE)
    return w1, b1, w2, b2, w3, b3


def reference_f32(x, w1, b1, w2, b2, w3, b3):
    """Pure float32 reference (the module's math, minus f64)."""
    h1 = jnp.maximum(x @ w1.T + b1, 0.0)
    h2 = jnp.maximum(h1 @ w2.T + b2, 0.0)
    return h2 @ w3.T + b3


def reference_mixed(x, w1, b1, w2, b2, w3, b3):
    """Reference that mirrors the kernel's bf16-operand / f32-accumulate scheme."""
    q = lambda a: a.astype(jnp.bfloat16).astype(jnp.float32)
    h1 = jnp.maximum(q(x) @ q(w1).T + b1, 0.0)
    h2 = jnp.maximum(q(h1) @ q(w2).T + b2, 0.0)
    return h2 @ w3.T + b3


if __name__ == "__main__":
    key = jax.random.PRNGKey(0)
    k_x, k_p = jax.random.split(key)

    batch = 8
    x = jax.random.normal(k_x, (batch, INPUT_SIZE), dtype=jnp.float32)
    params = init_params(k_p)

    out = jax.block_until_ready(atom_energy_nn(x, *params))

    assert out.shape == (batch, OUTPUT_SIZE)
    assert bool(jnp.all(jnp.isfinite(out)))

    # Tight check against a reference using the same bf16-operand / f32-accum
    # scheme, loose check against the pure-f32 math (bf16 quantization error).
    ref_mx = reference_mixed(x, *params)
    ref_32 = reference_f32(x, *params)
    assert jnp.allclose(out, ref_mx, atol=1e-4, rtol=1e-4)
    assert jnp.allclose(out, ref_32, atol=5e-2, rtol=5e-2)

    print("KERNEL_OK")
</pallas_src>

<mosaic_0001>
module attributes {stable_mosaic.version = 11 : i64} {
  func.func @_mlp_kernel(%arg0: i32, %arg1: memref<8x128xbf16, #tpu.memory_space<vmem>>, %arg2: memref<16x8xbf16, #tpu.memory_space<vmem>>, %arg3: memref<16x1xf32, #tpu.memory_space<vmem>>, %arg4: memref<16x16xbf16, #tpu.memory_space<vmem>>, %arg5: memref<16x1xf32, #tpu.memory_space<vmem>>, %arg6: memref<16x1xf32, #tpu.memory_space<vmem>>, %arg7: memref<1x1xf32, #tpu.memory_space<smem>>, %arg8: memref<1x128xf32, #tpu.memory_space<vmem>>) attributes {dimension_semantics = [#tpu.dimension_semantics<parallel>], iteration_bounds = array<i64: 1>, scalar_prefetch = 0 : i64, scratch_operands = 0 : i64, tpu.core_type = #tpu.core_type<tc>, window_params = [{transform_indices = @transform_0, window_bounds = array<i64: 8, 128>}, {pipeline_mode = #tpu.pipeline_mode<synchronous>, transform_indices = @transform_1, window_bounds = array<i64: 16, 8>}, {pipeline_mode = #tpu.pipeline_mode<synchronous>, transform_indices = @transform_2, window_bounds = array<i64: 16, 1>}, {pipeline_mode = #tpu.pipeline_mode<synchronous>, transform_indices = @transform_3, window_bounds = array<i64: 16, 16>}, {pipeline_mode = #tpu.pipeline_mode<synchronous>, transform_indices = @transform_4, window_bounds = array<i64: 16, 1>}, {pipeline_mode = #tpu.pipeline_mode<synchronous>, transform_indices = @transform_5, window_bounds = array<i64: 16, 1>}, {transform_indices = @transform_6, window_bounds = array<i64: 1, 1>}, {transform_indices = @transform_7, window_bounds = array<i64: 1, 128>}]} {
    %c0 = arith.constant 0 : index
    %c0_0 = arith.constant 0 : index
    %0 = vector.load %arg1[%c0, %c0_0] : memref<8x128xbf16, #tpu.memory_space<vmem>>, vector<8x128xbf16>
    %c0_1 = arith.constant 0 : index
    %c0_2 = arith.constant 0 : index
    %1 = vector.load %arg2[%c0_1, %c0_2] : memref<16x8xbf16, #tpu.memory_space<vmem>>, vector<16x8xbf16>
    %cst = arith.constant dense<0.000000e+00> : vector<16x128xf32>
    %2 = tpu.matmul %1, %0, %cst {dimension_numbers = #tpu.dot_dimension_numbers<[1], [0], [0], [1], [0, 0, 1, 1], [], []>} : vector<16x8xbf16>, vector<8x128xbf16>, vector<16x128xf32> -> vector<16x128xf32>
    %c0_3 = arith.constant 0 : index
    %c0_4 = arith.constant 0 : index
    %3 = vector.load %arg3[%c0_3, %c0_4] : memref<16x1xf32, #tpu.memory_space<vmem>>, vector<16x1xf32>
    %4 = vector.broadcast %3 : vector<16x1xf32> to vector<16x128xf32>
    %5 = arith.addf %2, %4 : vector<16x128xf32>
    %cst_5 = arith.constant 0.000000e+00 : f32
    %6 = vector.broadcast %cst_5 : f32 to vector<16x128xf32>
    %7 = arith.maximumf %5, %6 : vector<16x128xf32>
    %c0_6 = arith.constant 0 : index
    %c0_7 = arith.constant 0 : index
    %8 = vector.load %arg4[%c0_6, %c0_7] : memref<16x16xbf16, #tpu.memory_space<vmem>>, vector<16x16xbf16>
    %9 = arith.truncf %7 : vector<16x128xf32> to vector<16x128xbf16>
    %cst_8 = arith.constant dense<0.000000e+00> : vector<16x128xf32>
    %10 = tpu.matmul %8, %9, %cst_8 {dimension_numbers = #tpu.dot_dimension_numbers<[1], [0], [0], [1], [0, 0, 1, 1], [], []>} : vector<16x16xbf16>, vector<16x128xbf16>, vector<16x128xf32> -> vector<16x128xf32>
    %c0_9 = arith.constant 0 : index
    %c0_10 = arith.constant 0 : index
    %11 = vector.load %arg5[%c0_9, %c0_10] : memref<16x1xf32, #tpu.memory_space<vmem>>, vector<16x1xf32>
    %12 = vector.broadcast %11 : vector<16x1xf32> to vector<16x128xf32>
    %13 = arith.addf %10, %12 : vector<16x128xf32>
    %cst_11 = arith.constant 0.000000e+00 : f32
    %14 = vector.broadcast %cst_11 : f32 to vector<16x128xf32>
    %15 = arith.maximumf %13, %14 : vector<16x128xf32>
    %c0_12 = arith.constant 0 : index
    %c0_13 = arith.constant 0 : index
    %16 = vector.load %arg6[%c0_12, %c0_13] : memref<16x1xf32, #tpu.memory_space<vmem>>, vector<16x1xf32>
    %17 = vector.broadcast %16 : vector<16x1xf32> to vector<16x128xf32>
    %18 = arith.mulf %15, %17 : vector<16x128xf32>
    %cst_14 = arith.constant dense<0.000000e+00> : vector<128xf32>
    %19 = vector.multi_reduction <add>, %18, %cst_14 [0] : vector<16x128xf32> to vector<128xf32>
    %20 = vector.shape_cast %19 : vector<128xf32> to vector<1x128xf32>
    %c0_15 = arith.constant 0 : index
    %c0_16 = arith.constant 0 : index
    %21 = memref.load %arg7[%c0_15, %c0_16] : memref<1x1xf32, #tpu.memory_space<smem>>
    %22 = vector.broadcast %21 : f32 to vector<1x128xf32>
    %23 = arith.addf %20, %22 : vector<1x128xf32>
    %c0_17 = arith.constant 0 : index
    %c0_18 = arith.constant 0 : index
    %24 = vector.load %arg8[%c0_17, %c0_18] : memref<1x128xf32, #tpu.memory_space<vmem>>, vector<1x128xf32>
    tpu.vector_store %arg8[%c0_17, %c0_18], %23 {strides = array<i32>} : memref<1x128xf32, #tpu.memory_space<vmem>>, vector<1x128xf32>,
    return
  }
  func.func @transform_0(%arg0: i32) -> (i32, i32) {
    %c0_i32 = arith.constant 0 : i32
    %c0_i32_0 = arith.constant 0 : i32
    return %c0_i32, %arg0 : i32, i32
  }
  func.func @transform_1(%arg0: i32) -> (i32, i32) {
    %c0_i32 = arith.constant 0 : i32
    %c0_i32_0 = arith.constant 0 : i32
    %c0_i32_1 = arith.constant 0 : i32
    return %c0_i32, %c0_i32_0 : i32, i32
  }
  func.func @transform_2(%arg0: i32) -> (i32, i32) {
    %c0_i32 = arith.constant 0 : i32
    %c0_i32_0 = arith.constant 0 : i32
    %c0_i32_1 = arith.constant 0 : i32
    return %c0_i32, %c0_i32_0 : i32, i32
  }
  func.func @transform_3(%arg0: i32) -> (i32, i32) {
    %c0_i32 = arith.constant 0 : i32
    %c0_i32_0 = arith.constant 0 : i32
    %c0_i32_1 = arith.constant 0 : i32
    return %c0_i32, %c0_i32_0 : i32, i32
  }
  func.func @transform_4(%arg0: i32) -> (i32, i32) {
    %c0_i32 = arith.constant 0 : i32
    %c0_i32_0 = arith.constant 0 : i32
    %c0_i32_1 = arith.constant 0 : i32
    return %c0_i32, %c0_i32_0 : i32, i32
  }
  func.func @transform_5(%arg0: i32) -> (i32, i32) {
    %c0_i32 = arith.constant 0 : i32
    %c0_i32_0 = arith.constant 0 : i32
    %c0_i32_1 = arith.constant 0 : i32
    return %c0_i32, %c0_i32_0 : i32, i32
  }
  func.func @transform_6(%arg0: i32) -> (i32, i32) {
    %c0_i32 = arith.constant 0 : i32
    %c0_i32_0 = arith.constant 0 : i32
    %c0_i32_1 = arith.constant 0 : i32
    return %c0_i32, %c0_i32_0 : i32, i32
  }
  func.func @transform_7(%arg0: i32) -> (i32, i32) {
    %c0_i32 = arith.constant 0 : i32
    %c0_i32_0 = arith.constant 0 : i32
    return %c0_i32, %arg0 : i32, i32
  }
}

</mosaic_0001>

<llo_original>
// kernel: tpu_custom_call.1
$region0: #{tpu_custom_call.1}
  #allocation0 [shape = 'u32[]', space=smem, size = 0x4, offset = 0x4, fixed_abs, tag = 'smem constant byte address 0x4 - core index']
  #allocation1 [shape = 'u32[72,128]{1,0:T(1,128)}', space=vmem, size = 0x9000, scoped, tag = 'internal scratch']
  #allocation2 [shape = 'f32[1,1]{1,0:T(1,128)S(6)}', space=smem, size = 0x200, scoped, tag = 'scoped memory for tpu_custom_call.1']
  %s0 = inlined_call_operand.vmem [shape: bf16[8,128], index: 0, kind: input, shape index: {}]
  %s1 = inlined_call_operand.vmem [shape: bf16[16,8], index: 1, kind: input, shape index: {}]
  %s2 = inlined_call_operand.vmem [shape: f32[16,1], index: 2, kind: input, shape index: {}]
  %s3 = inlined_call_operand.vmem [shape: bf16[16,16], index: 3, kind: input, shape index: {}]
  %s4 = inlined_call_operand.vmem [shape: f32[16,1], index: 4, kind: input, shape index: {}]
  %s5 = inlined_call_operand.vmem [shape: f32[16,1], index: 5, kind: input, shape index: {}]
  %s6 = inlined_call_operand.<no memory space> [shape: f32[1,1], index: 6, kind: input, shape index: {}]
  %s7 = inlined_call_operand.hbm [shape: f32[1,128], index: 7, kind: output, shape index: {}]
  %s8 = sld [smem:[#allocation0]]
  $region38: #{tpu_custom_call.1} parent=0
    _
  %s10 = ssub.s32 1, %s8
  %s11 = scalar_select 0, %s10, %s8
  %12 = sst [smem:[#allocation2]] %s6
  $region1: #{tpu_custom_call.1} parent=0
    #allocation3 [shape = 'u8[512]{0}', space=vmem, size = 0x400, scoped, tag = 'output window, operand 0, single buffered']
    #allocation4 [shape = 's32[1]{0}', space=sflag, size = 0x4, scoped, tag = 'scoped memory for tpu_custom_call.1']
    %13 = vsyncpa [#allocation4], 0
    // Predicated region
    $region2: #{tpu_custom_call.1} parent=1 // pred_check
      _
    $region3: #{tpu_custom_call.1} parent=1 // pred_check_branch
      %15 = sbr.rel (0) target = $region5
    $region4: #{tpu_custom_call.1} parent=1 // pred_region
      _
    $region5: #{tpu_custom_call.1} parent=1 // pred_fallthru
      _
    // Predicated region
    $region6: #{tpu_custom_call.1} parent=1 // pred_check
      _
    $region7: #{tpu_custom_call.1} parent=1 // pred_check_branch
      %17 = sbr.rel (0) target = $region9
    $region8: #{tpu_custom_call.1} parent=1 // pred_region
      _
    $region9: #{tpu_custom_call.1} parent=1 // pred_fallthru
      _
    // Predicated region
    $region10: #{tpu_custom_call.1} parent=1 // pred_check
      _
    $region11: #{tpu_custom_call.1} parent=1 // pred_check_branch
      %19 = sbr.rel (0) target = $region13
    $region12: #{tpu_custom_call.1} parent=1 // pred_region
      _
    $region13: #{tpu_custom_call.1} parent=1 // pred_fallthru
      _
    // Predicated region
    $region14: #{tpu_custom_call.1} parent=1 // pred_check
      _
    $region15: #{tpu_custom_call.1} parent=1 // pred_check_branch
      %21 = sbr.rel (0) target = $region17
    $region16: #{tpu_custom_call.1} parent=1 // pred_region
      _
    $region17: #{tpu_custom_call.1} parent=1 // pred_fallthru
      _
    // Predicated region
    $region18: #{tpu_custom_call.1} parent=1 // pred_check
      _
    $region19: #{tpu_custom_call.1} parent=1 // pred_check_branch
      %23 = sbr.rel (0) target = $region21
    $region20: #{tpu_custom_call.1} parent=1 // pred_region
      _
    $region21: #{tpu_custom_call.1} parent=1 // pred_fallthru
      _
    // Predicated region
    $region22: #{tpu_custom_call.1} parent=1 // pred_check
      _
    $region23: #{tpu_custom_call.1} parent=1 // pred_check_branch
      %25 = sbr.rel (0) target = $region25
    $region24: #{tpu_custom_call.1} parent=1 // pred_region
      _
    $region25: #{tpu_custom_call.1} parent=1 // pred_fallthru
      _
    // Predicated region
    $region26: #{tpu_custom_call.1} parent=1 // pred_check
      _
    $region27: #{tpu_custom_call.1} parent=1 // pred_check_branch
      %27 = sbr.rel (0) target = $region29
    $region28: #{tpu_custom_call.1} parent=1 // pred_region
      _
    $region29: #{tpu_custom_call.1} parent=1 // pred_fallthru
      _
    %v29 = vld [vmem:[%s0] sm:$0xf]
    %v30 = vld [vmem:[%s1] sm:$0xf]
    %v31 = vld [vmem:[%s1 + $0x4] sm:$0xf]
    %v32 = vld [vmem:[%s2] sm:$0xff]
    %v33 = vld [vmem:[%s2 + $0x8] sm:$0xff]
    %35 = vset.pattern.permute.xlu0 0
    %36 = vperm.xlu0 %35, %v32
    %v37 = vpop.permute.xlu0 %36
    %40 = vset.pattern.permute.xlu0 0
    %41 = vperm.xlu0 %40, %v33
    %v42 = vpop.permute.xlu0 %41
    %v46 = vunpack.c.l.b16 %v30
    %v47 = vunpack.c.l.b16 %v31
    %v48 = vpack.c.b16 %v47, %v46
    %vm49 = vcmask 64512
    %v51 = vsel %vm49, %v48, 0
    %vm53 = vcmask 1043456
    %v55 = vsel %vm53, %v29, 0
    %57 = vmatpush.bf16.msra.mxu0 0
    %58 = vmatpush.bf16.msra.mxu0 0
    %59 = vmatpush.bf16.msra.mxu0 0
    %60 = vmatpush.bf16.msra.mxu0 0
    %61 = vmatpush.bf16.msra.mxu0 0
    %62 = vmatpush.bf16.msra.mxu0 0
    %63 = vmatpush.bf16.msra.mxu0 0
    %64 = vmatpush.bf16.msra.mxu0 %v55
    %65 = vmatmul.bf16.gmra.mxu0 %v51
    %v66 = vpop.f32.mrf.mxu0
    %v67 = vadd.f32 %v37, %v66
    %v68 = vpop.f32.mrf.mxu0
    %v69 = vadd.f32 %v42, %v68
    %70 = vdwg.mxu0
    %v71 = vmax.f32 %v67, 0.0
    %v72 = vmax.f32 %v69, 0.0
    %v73 = vld [vmem:[%s3] sm:$0xf]
    %v74 = vld [vmem:[%s3 + $0x4] sm:$0xf]
    %v75 = vpack.c.bf16 %v72, %v71
    %v76 = vld [vmem:[%s4] sm:$0xff]
    %v77 = vld [vmem:[%s4 + $0x8] sm:$0xff]
    %79 = vset.pattern.permute.xlu0 0
    %80 = vperm.xlu0 %79, %v76
    %v81 = vpop.permute.xlu0 %80
    %84 = vset.pattern.permute.xlu0 0
    %85 = vperm.xlu0 %84, %v77
    %v86 = vpop.permute.xlu0 %85
    %v90 = vunpack.c.l.b16 %v73
    %v91 = vunpack.c.l.b16 %v74
    %v92 = vpack.c.b16 %v91, %v90
    %vm93 = vcmask 130048
    %v95 = vsel %vm93, %v92, 0
    %97 = vmatpush.bf16.msra.mxu0 0
    %98 = vmatpush.bf16.msra.mxu0 0
    %99 = vmatpush.bf16.msra.mxu0 0
    %100 = vmatpush.bf16.msra.mxu0 0
    %101 = vmatpush.bf16.msra.mxu0 0
    %102 = vmatpush.bf16.msra.mxu0 0
    %103 = vmatpush.bf16.msra.mxu0 0
    %104 = vmatpush.bf16.msra.mxu0 %v75
    %105 = vmatmul.bf16.gmra.mxu0 %v95
    %v106 = vpop.f32.mrf.mxu0
    %v107 = vadd.f32 %v81, %v106
    %v108 = vpop.f32.mrf.mxu0
    %v109 = vadd.f32 %v86, %v108
    %110 = vdwg.mxu0
    %v111 = vmax.f32 %v107, 0.0
    %v112 = vmax.f32 %v109, 0.0
    %v113 = vld [vmem:[%s5] sm:$0xff]
    %v114 = vld [vmem:[%s5 + $0x8] sm:$0xff]
    %116 = vset.pattern.permute.xlu0 0
    %117 = vperm.xlu0 %116, %v113
    %v118 = vpop.permute.xlu0 %117
    %121 = vset.pattern.permute.xlu0 0
    %122 = vperm.xlu0 %121, %v114
    %v123 = vpop.permute.xlu0 %122
    %v125 = vmul.f32 %v111, %v118
    %v126 = vmul.f32 %v112, %v123
    %v127 = vadd.f32 %v125, %v126
    %v128 = vrot.slane %v127, 4
    %v129 = vadd.f32 %v127, %v128
    %v130 = vrot.slane %v129, 2
    %v131 = vadd.f32 %v129, %v130
    %v132 = vrot.slane %v131, 1
    %v133 = vadd.f32 %v131, %v132
    %s134 = sld [smem:[#allocation2]]
    %v135 = vstv %s134
    %v136 = vadd.f32 %v133, %v135
    %137 = vst [vmem:[#allocation3] sm:$0x1] %v136
    // Predicated region
    $region30: #{tpu_custom_call.1} parent=1 // pred_check
      _
    $region31: #{tpu_custom_call.1} parent=1 // pred_check_branch
      %139 = sbr.rel (0) target = $region33
    $region32: #{tpu_custom_call.1} parent=1 // pred_region
      %141 = vsyncadd [#allocation4], 0
      %s143 = sshll.u32 [#allocation3], 4
      %s144 = int_to_ptr.vmem [resolvable:$true] %s143
      %s145 = sshll.u32 %s7, 4
      %s146 = int_to_ptr.hbm [resolvable:$true] %s145
      %148 = dma.vmem_to_hbm [thread:$0]  %s144, 16, %s146, [#allocation4]
    $region33: #{tpu_custom_call.1} parent=1 // pred_fallthru
      _
    // Predicated region
    $region34: #{tpu_custom_call.1} parent=1 // pred_check
      _
    $region35: #{tpu_custom_call.1} parent=1 // pred_check_branch
      %150 = sbr.rel (0) target = $region37
    $region36: #{tpu_custom_call.1} parent=1 // pred_region
      %152 = dma.done [#allocation4], 16
    $region37: #{tpu_custom_call.1} parent=1 // pred_fallthru
      _
    %153 = vsyncpa [#allocation4], 1

</llo_original>
